<compile_context>
chip_gen: v6e
topology: v6e:2x2x1
jax: 0.10.0
libtpu: 0.0.40
codegen_flags: <defaults>
</compile_context>

<pallas_src>
import functools

import jax
import jax.numpy as jnp
from jax.experimental import pallas as pl
from jax.experimental.pallas import tpu as pltpu


# ------------------ fused LayerNorm (layer 0 only) + input projection ------------------
# Computes, for every direction d:  gx_d = sum_j x_j @ W[j][d] + b_d
# (optionally LayerNorm-ing x_0 first).  Row-tiled over R = K*B.
def _in_proj_kernel(*refs, nin, ndir, ln):
    idx = 0
    xs = refs[idx:idx + nin]; idx += nin
    if ln:
        g_ref, beta_ref = refs[idx], refs[idx + 1]; idx += 2
    ws = refs[idx:idx + nin * ndir]; idx += nin * ndir
    bs = refs[idx:idx + ndir]; idx += ndir
    outs = refs[idx:idx + ndir]

    xvals = []
    for j in range(nin):
        xv = xs[j][...].astype(jnp.float32)
        if ln and j == 0:
            mean = jnp.mean(xv, axis=-1, keepdims=True)
            var = jnp.mean((xv - mean) ** 2, axis=-1, keepdims=True)
            xv = (xv - mean) * jax.lax.rsqrt(var + 1e-5) * g_ref[...] + beta_ref[...]
        xvals.append(xv)

    for d in range(ndir):
        acc = jnp.dot(xvals[0], ws[0 * ndir + d][...],
                      preferred_element_type=jnp.float32)
        for j in range(1, nin):
            acc = acc + jnp.dot(xvals[j], ws[j * ndir + d][...],
                                preferred_element_type=jnp.float32)
        outs[d][...] = (acc + bs[d][...]).astype(outs[d].dtype)


def input_projection(inputs, weights, biases, hidden, ln_params=None, block_rows=256):
    """inputs: list of (R, Din_j); weights[j][d]: (Din_j, 4H); biases[d]: (1, 4H)."""
    R = inputs[0].shape[0]
    nin = len(inputs)
    ndir = len(biases)
    H = hidden
    TR = R if R <= block_rows else block_rows
    ln = ln_params is not None

    in_specs = [pl.BlockSpec((TR, x.shape[1]), lambda i: (i, 0)) for x in inputs]
    args = list(inputs)
    if ln:
        Nf = inputs[0].shape[1]
        in_specs += [pl.BlockSpec((1, Nf), lambda i: (0, 0)),
                     pl.BlockSpec((1, Nf), lambda i: (0, 0))]
        args += [ln_params[0].reshape(1, Nf), ln_params[1].reshape(1, Nf)]
    for j in range(nin):
        for d in range(ndir):
            w = weights[j][d]
            in_specs.append(pl.BlockSpec(w.shape, lambda i: (0, 0)))
            args.append(w)
    for d in range(ndir):
        in_specs.append(pl.BlockSpec((1, 4 * H), lambda i: (0, 0)))
        args.append(biases[d])

    out_specs = tuple(pl.BlockSpec((TR, 4 * H), lambda i: (i, 0)) for _ in range(ndir))
    out_shape = tuple(jax.ShapeDtypeStruct((R, 4 * H), jnp.float32) for _ in range(ndir))

    kern = functools.partial(_in_proj_kernel, nin=nin, ndir=ndir, ln=ln)
    outs = pl.pallas_call(
        kern,
        out_shape=out_shape,
        grid=(pl.cdiv(R, TR),),
        in_specs=in_specs,
        out_specs=out_specs,
        compiler_params=pltpu.CompilerParams(dimension_semantics=("parallel",)),
    )(*args)
    return outs if isinstance(outs, tuple) else (outs,)


# ------------------------ fused bidirectional LSTM recurrence -------------------------
# Per grid step: T timesteps for the forward direction (time block i) and T timesteps for
# the backward direction (time block nblk-1-i, traversed in reverse).  Input gates
# (x@W_ih + b) are precomputed; here only h@W_hh + pointwise cell math runs.
# pack_padded_sequence semantics: state frozen / output zero at padded steps; the
# backward state stays at zero-init until t == length[b]-1.
def _lstm_kernel(*refs, ndir, hidden, T, K):
    H = hidden
    gx = refs[0:ndir]
    whh = refs[ndir:2 * ndir]
    mask_ref = refs[2 * ndir]
    outs = refs[2 * ndir + 1: 2 * ndir + 1 + ndir]
    scr = refs[2 * ndir + 1 + ndir:]
    hs = scr[0:ndir]
    cs = scr[ndir:2 * ndir]

    step = pl.program_id(0)

    @pl.when(step == 0)
    def _():
        for d in range(ndir):
            hs[d][...] = jnp.zeros_like(hs[d])
            cs[d][...] = jnp.zeros_like(cs[d])

    for tt in range(T):
        for d in range(ndir):
            if d == 0:                       # forward direction
                lt = tt
                tg = step * T + tt
            else:                            # backward direction
                lt = T - 1 - tt
                tg = (K - 1) - (step * T + tt)

            gates = gx[d][lt] + jnp.dot(hs[d][...], whh[d][...],
                                        preferred_element_type=jnp.float32)
            ig = jax.nn.sigmoid(gates[:, 0 * H:1 * H])
            fg = jax.nn.sigmoid(gates[:, 1 * H:2 * H])
            gg = jnp.tanh(gates[:, 2 * H:3 * H])
            og = jax.nn.sigmoid(gates[:, 3 * H:4 * H])

            c_new = fg * cs[d][...] + ig * gg
            h_new = og * jnp.tanh(c_new)

            m = mask_ref[tg]                 # (B, 1) float mask, resident block
            hs[d][...] = hs[d][...] + m * (h_new - hs[d][...])
            cs[d][...] = cs[d][...] + m * (c_new - cs[d][...])
            outs[d][lt] = (m * h_new).astype(outs[d].dtype)


def bilstm_layer(gx_list, mask, w_hh_list, hidden, T):
    ndir = len(gx_list)
    K, B, _ = gx_list[0].shape
    H = hidden
    nblk = K // T
    fwd_map = lambda i: (i, 0, 0)
    bwd_map = lambda i: (nblk - 1 - i, 0, 0)
    maps = [fwd_map, bwd_map]

    in_specs, args = [], []
    for d in range(ndir):
        in_specs.append(pl.BlockSpec((T, B, 4 * H), maps[d]))
        args.append(gx_list[d])
    for d in range(ndir):
        in_specs.append(pl.BlockSpec((H, 4 * H), lambda i: (0, 0)))
        args.append(w_hh_list[d])
    in_specs.append(pl.BlockSpec((K, B, 1), lambda i: (0, 0, 0)))   # resident padding mask
    args.append(mask)

    out_specs = tuple(pl.BlockSpec((T, B, H), maps[d]) for d in range(ndir))
    out_shape = tuple(jax.ShapeDtypeStruct((K, B, H), jnp.float32) for _ in range(ndir))
    scratch = [pltpu.VMEM((B, H), jnp.float32) for _ in range(2 * ndir)]

    kern = functools.partial(_lstm_kernel, ndir=ndir, hidden=H, T=T, K=K)
    outs = pl.pallas_call(
        kern,
        out_shape=out_shape,
        grid=(nblk,),
        in_specs=in_specs,
        out_specs=out_specs,
        scratch_shapes=scratch,
        # time axis MUST stay sequential: the recurrence carries state in scratch.
        compiler_params=pltpu.CompilerParams(dimension_semantics=("arbitrary",)),
    )(*args)
    return outs if isinstance(outs, tuple) else (outs,)


# ----------------------------- FC + softmax over speakers -----------------------------
def _fc_softmax_kernel(*refs, nin, nspk, N):
    xs = refs[0:nin]
    ws = refs[nin:2 * nin]
    b_ref = refs[2 * nin]
    o_ref = refs[2 * nin + 1]

    logits = jnp.dot(xs[0][...], ws[0][...], preferred_element_type=jnp.float32)
    for j in range(1, nin):
        logits = logits + jnp.dot(xs[j][...], ws[j][...],
                                  preferred_element_type=jnp.float32)
    logits = logits + b_ref[...]                       # (TR, nspk*N)

    m = logits[:, 0:N]
    for s in range(1, nspk):
        m = jnp.maximum(m, logits[:, s * N:(s + 1) * N])
    e = jnp.exp(logits - jnp.tile(m, (1, nspk)))
    denom = e[:, 0:N]
    for s in range(1, nspk):
        denom = denom + e[:, s * N:(s + 1) * N]
    inv = 1.0 / denom
    o_ref[...] = (e * jnp.tile(inv, (1, nspk))).astype(o_ref.dtype)  # single lane-dense store


def fc_softmax(inputs, w_chunks, bias, nspk, N, block_rows=256):
    R = inputs[0].shape[0]
    nin = len(inputs)
    Dout = nspk * N
    TR = R if R <= block_rows else block_rows

    in_specs = [pl.BlockSpec((TR, x.shape[1]), lambda i: (i, 0)) for x in inputs]
    in_specs += [pl.BlockSpec(w.shape, lambda i: (0, 0)) for w in w_chunks]
    in_specs += [pl.BlockSpec((1, Dout), lambda i: (0, 0))]
    args = list(inputs) + list(w_chunks) + [bias]

    kern = functools.partial(_fc_softmax_kernel, nin=nin, nspk=nspk, N=N)
    return pl.pallas_call(
        kern,
        out_shape=jax.ShapeDtypeStruct((R, Dout), jnp.float32),
        grid=(pl.cdiv(R, TR),),
        in_specs=in_specs,
        out_specs=pl.BlockSpec((TR, Dout), lambda i: (i, 0)),
        compiler_params=pltpu.CompilerParams(dimension_semantics=("parallel",)),
    )(*args)


# ------------------------------------- Separator ---------------------------------------
class SeparatorPallas:
    """Pallas port of the PyTorch Separator (LayerNorm -> BiLSTM -> FC -> softmax(dim=nspk))."""

    def __init__(self, N, hidden_size, num_layers, bidirectional=True, nspk=2,
                 key=jax.random.PRNGKey(0)):
        self.N = N
        self.H = hidden_size
        self.num_layers = num_layers
        self.ndir = 2 if bool(bidirectional) else 1
        self.nspk = nspk
        H, ndir = hidden_size, self.ndir

        stdv = 1.0 / float(H) ** 0.5
        keys = iter(jax.random.split(key, 4 * num_layers * ndir + 2))

        def u(shape):
            return jax.random.uniform(next(keys), shape, jnp.float32, -stdv, stdv)

        # LayerNorm params (PyTorch defaults)
        self.ln_gamma = jnp.ones((N,), jnp.float32)
        self.ln_beta = jnp.zeros((N,), jnp.float32)

        # LSTM params, stored transposed: w_ih [D_in, 4H], w_hh [H, 4H]; b = b_ih + b_hh
        self.layers = []
        for layer in range(num_layers):
            d_in = N if layer == 0 else ndir * H
            w_ih, w_hh, bias = [], [], []
            for _ in range(ndir):
                w_ih.append(u((d_in, 4 * H)))
                w_hh.append(u((H, 4 * H)))
                bias.append((u((4 * H,)) + u((4 * H,))).reshape(1, 4 * H))
            if layer == 0:
                w_in = [[w_ih[d] for d in range(ndir)]]          # weights[j][d]
            else:
                # split each direction's input weight by previous-layer direction chunk
                w_in = [[w_ih[d][j * H:(j + 1) * H, :] for d in range(ndir)]
                        for j in range(ndir)]
            self.layers.append(dict(w_in=w_in, b_in=bias, w_hh=w_hh))

        # fc1: Linear(ndir*H -> nspk*N), stored transposed and split per direction chunk
        self.fc_w = u((ndir * H, nspk * N))
        self.fc_b = u((nspk * N,)).reshape(1, nspk * N)
        self.fc_w_chunks = [self.fc_w[j * H:(j + 1) * H, :] for j in range(ndir)]

    def __call__(self, mixture_e, mixture_lengths):
        B, K, N = mixture_e.shape
        assert N == self.N
        H, ndir = self.H, self.ndir
        T = max(t for t in (8, 4, 2, 1) if K % t == 0)    # timesteps per grid step

        # time-major glue transpose (batch_first interface); stays time-major afterwards
        x2d = jnp.transpose(mixture_e, (1, 0, 2)).reshape(K * B, N).astype(jnp.float32)

        # padding mask (K, B, 1): 1.0 while t < length[b], else 0.0
        mask = (jnp.arange(K)[:, None] < mixture_lengths.astype(jnp.int32)[None, :])
        mask = mask.astype(jnp.float32).reshape(K, B, 1)

        inputs = [x2d]
        for li, layer in enumerate(self.layers):
            ln_params = (self.ln_gamma, self.ln_beta) if li == 0 else None
            gx = input_projection(inputs, layer["w_in"], layer["b_in"], H,
                                  ln_params=ln_params)
            gx = [g.reshape(K, B, 4 * H) for g in gx]
            outs = bilstm_layer(gx, mask, layer["w_hh"], H, T)
            inputs = [o.reshape(K * B, H) for o in outs]  # fwd/bwd kept separate (no concat)

        masks2d = fc_softmax(inputs, self.fc_w_chunks, self.fc_b, self.nspk, N)
        est = masks2d.reshape(K, B, self.nspk, N)
        return jnp.transpose(est, (1, 0, 2, 3))           # [B, K, nspk, N]


if __name__ == "__main__":
    B, K, N = 2, 8, 32
    H, L, nspk = 32, 2, 2

    key = jax.random.PRNGKey(0)
    k_in, k_par = jax.random.split(key)
    mixture_e = jax.random.normal(k_in, (B, K, N), jnp.float32)
    # lengths sorted descending (pack_padded_sequence default enforce_sorted=True)
    mixture_lengths = jnp.array([8, 6], dtype=jnp.int32)

    sep = SeparatorPallas(N, H, L, bidirectional=True, nspk=nspk, key=k_par)
    est_mask = jax.block_until_ready(sep(mixture_e, mixture_lengths))

    assert est_mask.shape == (B, K, nspk, N)
    assert bool(jnp.all(jnp.isfinite(est_mask)))
    # softmax over the speaker dim must sum to 1 everywhere
    assert bool(jnp.allclose(jnp.sum(est_mask, axis=2), 1.0, atol=1e-4))
    print("KERNEL_OK")
</pallas_src>

<mosaic_0001>
module attributes {stable_mosaic.version = 11 : i64} {
  func.func @_in_proj_kernel(%arg0: i32, %arg1: memref<16x32xf32, #tpu.memory_space<vmem>>, %arg2: memref<1x32xf32, #tpu.memory_space<vmem>>, %arg3: memref<1x32xf32, #tpu.memory_space<vmem>>, %arg4: memref<32x128xf32, #tpu.memory_space<vmem>>, %arg5: memref<32x128xf32, #tpu.memory_space<vmem>>, %arg6: memref<1x128xf32, #tpu.memory_space<vmem>>, %arg7: memref<1x128xf32, #tpu.memory_space<vmem>>, %arg8: memref<16x128xf32, #tpu.memory_space<vmem>>, %arg9: memref<16x128xf32, #tpu.memory_space<vmem>>) attributes {dimension_semantics = [#tpu.dimension_semantics<parallel>], iteration_bounds = array<i64: 1>, scalar_prefetch = 0 : i64, scratch_operands = 0 : i64, tpu.core_type = #tpu.core_type<tc>, window_params = [{transform_indices = @transform_0, window_bounds = array<i64: 16, 32>}, {pipeline_mode = #tpu.pipeline_mode<synchronous>, transform_indices = @transform_1, window_bounds = array<i64: 1, 32>}, {pipeline_mode = #tpu.pipeline_mode<synchronous>, transform_indices = @transform_2, window_bounds = array<i64: 1, 32>}, {pipeline_mode = #tpu.pipeline_mode<synchronous>, transform_indices = @transform_3, window_bounds = array<i64: 32, 128>}, {pipeline_mode = #tpu.pipeline_mode<synchronous>, transform_indices = @transform_4, window_bounds = array<i64: 32, 128>}, {pipeline_mode = #tpu.pipeline_mode<synchronous>, transform_indices = @transform_5, window_bounds = array<i64: 1, 128>}, {pipeline_mode = #tpu.pipeline_mode<synchronous>, transform_indices = @transform_6, window_bounds = array<i64: 1, 128>}, {transform_indices = @transform_7, window_bounds = array<i64: 16, 128>}, {transform_indices = @transform_8, window_bounds = array<i64: 16, 128>}]} {
    %c0 = arith.constant 0 : index
    %c0_0 = arith.constant 0 : index
    %0 = vector.load %arg1[%c0, %c0_0] : memref<16x32xf32, #tpu.memory_space<vmem>>, vector<16x32xf32>
    %cst = arith.constant dense<0.000000e+00> : vector<16xf32>
    %1 = vector.multi_reduction <add>, %0, %cst [1] : vector<16x32xf32> to vector<16xf32>
    %2 = vector.shape_cast %1 : vector<16xf32> to vector<16x1xf32>
    %cst_1 = arith.constant 3.200000e+01 : f32
    %3 = vector.broadcast %cst_1 : f32 to vector<16x1xf32>
    %4 = arith.divf %2, %3 : vector<16x1xf32>
    %5 = vector.broadcast %4 : vector<16x1xf32> to vector<16x32xf32>
    %6 = arith.subf %0, %5 : vector<16x32xf32>
    %7 = arith.mulf %6, %6 : vector<16x32xf32>
    %cst_2 = arith.constant dense<0.000000e+00> : vector<16xf32>
    %8 = vector.multi_reduction <add>, %7, %cst_2 [1] : vector<16x32xf32> to vector<16xf32>
    %9 = vector.shape_cast %8 : vector<16xf32> to vector<16x1xf32>
    %cst_3 = arith.constant 3.200000e+01 : f32
    %10 = vector.broadcast %cst_3 : f32 to vector<16x1xf32>
    %11 = arith.divf %9, %10 : vector<16x1xf32>
    %12 = vector.broadcast %4 : vector<16x1xf32> to vector<16x32xf32>
    %13 = arith.subf %0, %12 : vector<16x32xf32>
    %cst_4 = arith.constant 9.99999974E-6 : f32
    %14 = vector.broadcast %cst_4 : f32 to vector<16x1xf32>
    %15 = arith.addf %11, %14 : vector<16x1xf32>
    %16 = math.rsqrt %15 : vector<16x1xf32>
    %17 = vector.broadcast %16 : vector<16x1xf32> to vector<16x32xf32>
    %18 = arith.mulf %13, %17 : vector<16x32xf32>
    %c0_5 = arith.constant 0 : index
    %c0_6 = arith.constant 0 : index
    %19 = vector.load %arg2[%c0_5, %c0_6] : memref<1x32xf32, #tpu.memory_space<vmem>>, vector<1x32xf32>
    %20 = vector.broadcast %19 : vector<1x32xf32> to vector<16x32xf32>
    %21 = arith.mulf %18, %20 : vector<16x32xf32>
    %c0_7 = arith.constant 0 : index
    %c0_8 = arith.constant 0 : index
    %22 = vector.load %arg3[%c0_7, %c0_8] : memref<1x32xf32, #tpu.memory_space<vmem>>, vector<1x32xf32>
    %23 = vector.broadcast %22 : vector<1x32xf32> to vector<16x32xf32>
    %24 = arith.addf %21, %23 : vector<16x32xf32>
    %c0_9 = arith.constant 0 : index
    %c0_10 = arith.constant 0 : index
    %25 = vector.load %arg4[%c0_9, %c0_10] : memref<32x128xf32, #tpu.memory_space<vmem>>, vector<32x128xf32>
    %cst_11 = arith.constant dense<0.000000e+00> : vector<16x128xf32>
    %26 = tpu.matmul %24, %25, %cst_11 {dimension_numbers = #tpu.dot_dimension_numbers<[1], [0], [0], [1], [0, 0, 1, 1], [], []>} : vector<16x32xf32>, vector<32x128xf32>, vector<16x128xf32> -> vector<16x128xf32>
    %c0_12 = arith.constant 0 : index
    %c0_13 = arith.constant 0 : index
    %27 = vector.load %arg6[%c0_12, %c0_13] : memref<1x128xf32, #tpu.memory_space<vmem>>, vector<1x128xf32>
    %28 = vector.broadcast %27 : vector<1x128xf32> to vector<16x128xf32>
    %29 = arith.addf %26, %28 : vector<16x128xf32>
    %c0_14 = arith.constant 0 : index
    %c0_15 = arith.constant 0 : index
    %30 = vector.load %arg8[%c0_14, %c0_15] : memref<16x128xf32, #tpu.memory_space<vmem>>, vector<16x128xf32>
    tpu.vector_store %arg8[%c0_14, %c0_15], %29 {strides = array<i32>} : memref<16x128xf32, #tpu.memory_space<vmem>>, vector<16x128xf32>,
    %c0_16 = arith.constant 0 : index
    %c0_17 = arith.constant 0 : index
    %31 = vector.load %arg5[%c0_16, %c0_17] : memref<32x128xf32, #tpu.memory_space<vmem>>, vector<32x128xf32>
    %cst_18 = arith.constant dense<0.000000e+00> : vector<16x128xf32>
    %32 = tpu.matmul %24, %31, %cst_18 {dimension_numbers = #tpu.dot_dimension_numbers<[1], [0], [0], [1], [0, 0, 1, 1], [], []>} : vector<16x32xf32>, vector<32x128xf32>, vector<16x128xf32> -> vector<16x128xf32>
    %c0_19 = arith.constant 0 : index
    %c0_20 = arith.constant 0 : index
    %33 = vector.load %arg7[%c0_19, %c0_20] : memref<1x128xf32, #tpu.memory_space<vmem>>, vector<1x128xf32>
    %34 = vector.broadcast %33 : vector<1x128xf32> to vector<16x128xf32>
    %35 = arith.addf %32, %34 : vector<16x128xf32>
    %c0_21 = arith.constant 0 : index
    %c0_22 = arith.constant 0 : index
    %36 = vector.load %arg9[%c0_21, %c0_22] : memref<16x128xf32, #tpu.memory_space<vmem>>, vector<16x128xf32>
    tpu.vector_store %arg9[%c0_21, %c0_22], %35 {strides = array<i32>} : memref<16x128xf32, #tpu.memory_space<vmem>>, vector<16x128xf32>,
    return
  }
  func.func @transform_0(%arg0: i32) -> (i32, i32) {
    %c0_i32 = arith.constant 0 : i32
    %c0_i32_0 = arith.constant 0 : i32
    return %arg0, %c0_i32 : i32, i32
  }
  func.func @transform_1(%arg0: i32) -> (i32, i32) {
    %c0_i32 = arith.constant 0 : i32
    %c0_i32_0 = arith.constant 0 : i32
    %c0_i32_1 = arith.constant 0 : i32
    return %c0_i32, %c0_i32_0 : i32, i32
  }
  func.func @transform_2(%arg0: i32) -> (i32, i32) {
    %c0_i32 = arith.constant 0 : i32
    %c0_i32_0 = arith.constant 0 : i32
    %c0_i32_1 = arith.constant 0 : i32
    return %c0_i32, %c0_i32_0 : i32, i32
  }
  func.func @transform_3(%arg0: i32) -> (i32, i32) {
    %c0_i32 = arith.constant 0 : i32
    %c0_i32_0 = arith.constant 0 : i32
    %c0_i32_1 = arith.constant 0 : i32
    return %c0_i32, %c0_i32_0 : i32, i32
  }
  func.func @transform_4(%arg0: i32) -> (i32, i32) {
    %c0_i32 = arith.constant 0 : i32
    %c0_i32_0 = arith.constant 0 : i32
    %c0_i32_1 = arith.constant 0 : i32
    return %c0_i32, %c0_i32_0 : i32, i32
  }
  func.func @transform_5(%arg0: i32) -> (i32, i32) {
    %c0_i32 = arith.constant 0 : i32
    %c0_i32_0 = arith.constant 0 : i32
    %c0_i32_1 = arith.constant 0 : i32
    return %c0_i32, %c0_i32_0 : i32, i32
  }
  func.func @transform_6(%arg0: i32) -> (i32, i32) {
    %c0_i32 = arith.constant 0 : i32
    %c0_i32_0 = arith.constant 0 : i32
    %c0_i32_1 = arith.constant 0 : i32
    return %c0_i32, %c0_i32_0 : i32, i32
  }
  func.func @transform_7(%arg0: i32) -> (i32, i32) {
    %c0_i32 = arith.constant 0 : i32
    %c0_i32_0 = arith.constant 0 : i32
    return %arg0, %c0_i32 : i32, i32
  }
  func.func @transform_8(%arg0: i32) -> (i32, i32) {
    %c0_i32 = arith.constant 0 : i32
    %c0_i32_0 = arith.constant 0 : i32
    return %arg0, %c0_i32 : i32, i32
  }
}

</mosaic_0001>

<llo_original>
// kernel: tpu_custom_call.1
$region0: #{tpu_custom_call.1}
  #allocation0 [shape = 'u32[]', space=smem, size = 0x4, offset = 0x4, fixed_abs, tag = 'smem constant byte address 0x4 - core index']
  #allocation1 [shape = 'u32[144,128]{1,0:T(1,128)}', space=vmem, size = 0x12000, scoped, tag = 'internal scratch']
  %s0 = inlined_call_operand.hbm [shape: f32[16,32], index: 0, kind: input, shape index: {}]
  %s1 = inlined_call_operand.vmem [shape: f32[1,32], index: 1, kind: input, shape index: {}]
  %s2 = inlined_call_operand.vmem [shape: f32[1,32], index: 2, kind: input, shape index: {}]
  %s3 = inlined_call_operand.hbm [shape: f32[32,128], index: 3, kind: input, shape index: {}]
  %s4 = inlined_call_operand.hbm [shape: f32[32,128], index: 4, kind: input, shape index: {}]
  %s5 = inlined_call_operand.vmem [shape: f32[1,128], index: 5, kind: input, shape index: {}]
  %s6 = inlined_call_operand.vmem [shape: f32[1,128], index: 6, kind: input, shape index: {}]
  %s7 = inlined_call_operand.hbm [shape: f32[16,128], index: 7, kind: output, shape index: {0}]
  %s8 = inlined_call_operand.hbm [shape: f32[16,128], index: 8, kind: output, shape index: {1}]
  %9 = xla_tuple %s7, %s8
  %s10 = sld [smem:[#allocation0]]
  $region58: #{tpu_custom_call.1} parent=0
    _
  %s12 = ssub.s32 1, %s10
  %s13 = scalar_select 0, %s12, %s10
  $region1: #{tpu_custom_call.1} parent=0
    #allocation2 [shape = 'u8[8192]{0}', space=vmem, size = 0x2000, scoped, tag = 'input window, operand 0, single buffered']
    #allocation3 [shape = 's32[1]{0}', space=sflag, size = 0x4, scoped, tag = 'scoped memory for tpu_custom_call.1']
    #allocation4 [shape = 's32[1]{0}', space=sflag, size = 0x4, scoped, tag = 'scoped memory for tpu_custom_call.1']
    #allocation5 [shape = 'u8[16384]{0}', space=vmem, size = 0x4000, scoped, tag = 'input window, operand 3, single buffered']
    #allocation6 [shape = 's32[1]{0}', space=sflag, size = 0x4, scoped, tag = 'scoped memory for tpu_custom_call.1']
    #allocation7 [shape = 'u8[16384]{0}', space=vmem, size = 0x4000, scoped, tag = 'input window, operand 4, single buffered']
    #allocation8 [shape = 'u8[8192]{0}', space=vmem, size = 0x2000, scoped, tag = 'output window, operand 0, single buffered']
    #allocation9 [shape = 'u8[8192]{0}', space=vmem, size = 0x2000, scoped, tag = 'output window, operand 1, single buffered']
    #allocation10 [shape = 's32[1]{0}', space=sflag, size = 0x4, scoped, tag = 'scoped memory for tpu_custom_call.1']
    %14 = vsyncpa [#allocation3], 0
    %15 = vsyncpa [#allocation6], 0
    %16 = vsyncpa [#allocation4], 0
    %17 = vsyncpa [#allocation10], 0
    // Predicated region
    $region2: #{tpu_custom_call.1} parent=1 // pred_check
      _
    $region3: #{tpu_custom_call.1} parent=1 // pred_check_branch
      %19 = sbr.rel (0) target = $region5
    $region4: #{tpu_custom_call.1} parent=1 // pred_region
      %s21 = ssub.s32 256, 256
      %22 = vsyncadd [#allocation3], %s21
      %s23 = sshll.u32 [#allocation2], 4
      %s24 = int_to_ptr.vmem [resolvable:$true] %s23
      %29 = dma.hbm_to_vmem [thread:$0]  %s0, 256, %s24, [#allocation3], 128, 128, 8
    $region5: #{tpu_custom_call.1} parent=1 // pred_fallthru
      _
    // Predicated region
    $region6: #{tpu_custom_call.1} parent=1 // pred_check
      _
    $region7: #{tpu_custom_call.1} parent=1 // pred_check_branch
      %31 = sbr.rel (0) target = $region9
    $region8: #{tpu_custom_call.1} parent=1 // pred_region
      _
    $region9: #{tpu_custom_call.1} parent=1 // pred_fallthru
      _
    // Predicated region
    $region10: #{tpu_custom_call.1} parent=1 // pred_check
      _
    $region11: #{tpu_custom_call.1} parent=1 // pred_check_branch
      %33 = sbr.rel (0) target = $region13
    $region12: #{tpu_custom_call.1} parent=1 // pred_region
      _
    $region13: #{tpu_custom_call.1} parent=1 // pred_fallthru
      _
    // Predicated region
    $region14: #{tpu_custom_call.1} parent=1 // pred_check
      _
    $region15: #{tpu_custom_call.1} parent=1 // pred_check_branch
      %35 = sbr.rel (0) target = $region17
    $region16: #{tpu_custom_call.1} parent=1 // pred_region
      %s37 = ssub.s32 512, 512
      %38 = vsyncadd [#allocation6], %s37
      %s39 = sshll.u32 [#allocation5], 4
      %s40 = int_to_ptr.vmem [resolvable:$true] %s39
      %45 = dma.hbm_to_vmem [thread:$0]  %s3, 512, %s40, [#allocation6], 128, 128, 8
    $region17: #{tpu_custom_call.1} parent=1 // pred_fallthru
      _
    // Predicated region
    $region18: #{tpu_custom_call.1} parent=1 // pred_check
      _
    $region19: #{tpu_custom_call.1} parent=1 // pred_check_branch
      %47 = sbr.rel (0) target = $region21
    $region20: #{tpu_custom_call.1} parent=1 // pred_region
      %s49 = ssub.s32 512, 512
      %50 = vsyncadd [#allocation6], %s49
      %s51 = sshll.u32 [#allocation7], 4
      %s52 = int_to_ptr.vmem [resolvable:$true] %s51
      %57 = dma.hbm_to_vmem [thread:$0]  %s4, 512, %s52, [#allocation6], 128, 128, 8
    $region21: #{tpu_custom_call.1} parent=1 // pred_fallthru
      _
    // Predicated region
    $region22: #{tpu_custom_call.1} parent=1 // pred_check
      _
    $region23: #{tpu_custom_call.1} parent=1 // pred_check_branch
      %59 = sbr.rel (0) target = $region25
    $region24: #{tpu_custom_call.1} parent=1 // pred_region
      _
    $region25: #{tpu_custom_call.1} parent=1 // pred_fallthru
      _
    // Predicated region
    $region26: #{tpu_custom_call.1} parent=1 // pred_check
      _
    $region27: #{tpu_custom_call.1} parent=1 // pred_check_branch
      %61 = sbr.rel (0) target = $region29
    $region28: #{tpu_custom_call.1} parent=1 // pred_region
      _
    $region29: #{tpu_custom_call.1} parent=1 // pred_fallthru
      _
    // Predicated region
    $region30: #{tpu_custom_call.1} parent=1 // pred_check
      _
    $region31: #{tpu_custom_call.1} parent=1 // pred_check_branch
      %63 = sbr.rel (0) target = $region33
    $region32: #{tpu_custom_call.1} parent=1 // pred_region
      %64 = dma.done [#allocation3], 256
    $region33: #{tpu_custom_call.1} parent=1 // pred_fallthru
      _
    // Predicated region
    $region34: #{tpu_custom_call.1} parent=1 // pred_check
      _
    $region35: #{tpu_custom_call.1} parent=1 // pred_check_branch
      %66 = sbr.rel (0) target = $region37
    $region36: #{tpu_custom_call.1} parent=1 // pred_region
      %67 = dma.done [#allocation6], 512
    $region37: #{tpu_custom_call.1} parent=1 // pred_fallthru
      _
    // Predicated region
    $region38: #{tpu_custom_call.1} parent=1 // pred_check
      _
    $region39: #{tpu_custom_call.1} parent=1 // pred_check_branch
      %69 = sbr.rel (0) target = $region41
    $region40: #{tpu_custom_call.1} parent=1 // pred_region
      %70 = dma.done [#allocation6], 512
    $region41: #{tpu_custom_call.1} parent=1 // pred_fallthru
      _
    %v71 = vld [vmem:[#allocation2] sm:$0xff]
    %v72 = vld [vmem:[#allocation2 + $0x8] sm:$0xff]
    %vm73 = vcmask 261120
    %v74 = vsel %vm73, %v71, 0.0
    %75 = vadd.xlane.f32.xlu0 %v74
    %v76 = vpop.xlane.xlu0 %75
    %v77 = vsel %vm73, %v72, 0.0
    %78 = vadd.xlane.f32.xlu0 %v77
    %v79 = vpop.xlane.xlu0 %78
    %v80 = vrcp.pop 32.0
    %v81 = vmul.f32 %v76, %v80
    %v82 = vmul.f32 %v79, %v80
    %v83 = vsub.f32 %v71, %v81
    %v84 = vsub.f32 %v72, %v82
    %v85 = vmul.f32 %v83, %v83
    %v86 = vmul.f32 %v84, %v84
    %v87 = vsel %vm73, %v85, 0.0
    %88 = vadd.xlane.f32.xlu0 %v87
    %v89 = vpop.xlane.xlu0 %88
    %v90 = vsel %vm73, %v86, 0.0
    %91 = vadd.xlane.f32.xlu0 %v90
    %v92 = vpop.xlane.xlu0 %91
    %v93 = vmul.f32 %v89, %v80
    %v94 = vmul.f32 %v92, %v80
    %v95 = vadd.f32 %v93, 1e-05
    %v96 = vadd.f32 %v94, 1e-05
    %v97 = vrsqrt.pop %v95
    %v98 = vrsqrt.pop %v96
    %v99 = vmul.f32 %v83, %v97
    %v100 = vmul.f32 %v84, %v98
    %v101 = vld [vmem:[%s1] sm:$0x1]
    %v103 = vlaneseq
    %v104 = vshrl.u32 %v103, 7
    %v105 = vsub.s32 0, %v104
    %v106 = vrot.slane %v101, %v105
    %v108 = vmul.f32 %v99, %v106
    %v109 = vmul.f32 %v100, %v106
    %v110 = vld [vmem:[%s2] sm:$0x1]
    %v112 = vlaneseq
    %v113 = vshrl.u32 %v112, 7
    %v114 = vsub.s32 0, %v113
    %v115 = vrot.slane %v110, %v114
    %v117 = vadd.f32 %v108, %v115
    %v118 = vadd.f32 %v109, %v115
    %v119 = vld [vmem:[#allocation5] sm:$0xff]
    %v120 = vld [vmem:[#allocation5 + $0x8] sm:$0xff]
    %v121 = vld [vmem:[#allocation5 + $0x10] sm:$0xff]
    %v122 = vld [vmem:[#allocation5 + $0x18] sm:$0xff]
    %v123 = vld [vmem:[%s5] sm:$0x1]
    %v125 = vlaneseq
    %v126 = vshrl.u32 %v125, 7
    %v127 = vsub.s32 0, %v126
    %v128 = vrot.slane %v123, %v127
    %v131 = vsel %vm73, %v117, 0
    %v134 = vsel %vm73, %v118, 0
    %136 = vmatprep.subr.mxu0 0.0
    %137 = vmatpush1.msra.mxu0 0.0
    %138 = vmatprep.subr.mxu0 0.0
    %139 = vmatpush1.msra.mxu0 0.0
    %140 = vmatprep.subr.mxu0 0.0
    %141 = vmatpush1.msra.mxu0 0.0
    %142 = vmatprep.subr.mxu0 0.0
    %143 = vmatpush1.msra.mxu0 0.0
    %144 = vmatprep.subr.mxu0 0.0
    %145 = vmatpush1.msra.mxu0 0.0
    %146 = vmatprep.subr.mxu0 0.0
    %147 = vmatpush1.msra.mxu0 0.0
    %148 = vmatprep.subr.mxu0 0.0
    %149 = vmatpush1.msra.mxu0 0.0
    %150 = vmatprep.subr.mxu0 0.0
    %151 = vmatpush1.msra.mxu0 0.0
    %152 = vmatprep.subr.mxu0 0.0
    %153 = vmatpush1.msra.mxu0 0.0
    %154 = vmatprep.subr.mxu0 0.0
    %155 = vmatpush1.msra.mxu0 0.0
    %156 = vmatprep.subr.mxu0 0.0
    %157 = vmatpush1.msra.mxu0 0.0
    %158 = vmatprep.subr.mxu0 0.0
    %159 = vmatpush1.msra.mxu0 0.0
    %160 = vmatprep.subr.mxu0 0.0
    %161 = vmatpush1.msra.mxu0 %v122
    %162 = vmatprep.subr.mxu0 0.0
    %163 = vmatpush1.msra.mxu0 %v121
    %164 = vmatprep.subr.mxu0 0.0
    %165 = vmatpush1.msra.mxu0 %v120
    %166 = vmatprep.subr.mxu0 0.0
    %167 = vmatpush1.msra.mxu0 %v119
    %168 = vmatprep.subr.mxu0 0.0
    %169 = vmatpush2.msra.mxu0 0.0
    %170 = vmatprep.subr.mxu0 0.0
    %171 = vmatpush2.msra.mxu0 0.0
    %172 = vmatprep.subr.mxu0 0.0
    %173 = vmatpush2.msra.mxu0 0.0
    %174 = vmatprep.subr.mxu0 0.0
    %175 = vmatpush2.msra.mxu0 0.0
    %176 = vmatprep.subr.mxu0 0.0
    %177 = vmatpush2.msra.mxu0 0.0
    %178 = vmatprep.subr.mxu0 0.0
    %179 = vmatpush2.msra.mxu0 0.0
    %180 = vmatprep.subr.mxu0 0.0
    %181 = vmatpush2.msra.mxu0 0.0
    %182 = vmatprep.subr.mxu0 0.0
    %183 = vmatpush2.msra.mxu0 0.0
    %184 = vmatprep.subr.mxu0 0.0
    %185 = vmatpush2.msra.mxu0 0.0
    %186 = vmatprep.subr.mxu0 0.0
    %187 = vmatpush2.msra.mxu0 0.0
    %188 = vmatprep.subr.mxu0 0.0
    %189 = vmatpush2.msra.mxu0 0.0
    %190 = vmatprep.subr.mxu0 0.0
    %191 = vmatpush2.msra.mxu0 0.0
    %192 = vmatprep.subr.mxu0 0.0
    %193 = vmatpush2.msra.mxu0 0.0
    %194 = vmatprep.subr.mxu0 0.0
    %195 = vmatpush2.msra.mxu0 0.0
    %196 = vmatprep.subr.mxu0 0.0
    %197 = vmatpush2.msra.mxu0 0.0
    %198 = vmatprep.subr.mxu0 0.0
    %199 = vmatpush2.msra.mxu0 0.0
    %200 = vmatprep.mubr.f32.mxu0 0.0
    %201 = vmatmul.mubr.f32.gmra.mxu0 %v131
    %v202 = vpop.f32.mrf.mxu0
    %v203 = vadd.f32 %v128, %v202
    %v204 = vpop.f32.mrf.mxu0
    %205 = vmatprep.mubr.f32.mxu0 0.0
    %206 = vmatmul.mubr.f32.gmra.mxu0 %v134
    %v207 = vpop.f32.mrf.mxu0
    %v208 = vadd.f32 %v128, %v207
    %v209 = vpop.f32.mrf.mxu0
    %210 = vdwg.mxu0
    %211 = vst [vmem:[#allocation8] sm:$0xff] %v203
    %212 = vst [vmem:[#allocation8 + $0x8] sm:$0xff] %v208
    %v213 = vld [vmem:[#allocation7] sm:$0xff]
    %v214 = vld [vmem:[#allocation7 + $0x8] sm:$0xff]
    %v215 = vld [vmem:[#allocation7 + $0x10] sm:$0xff]
    %v216 = vld [vmem:[#allocation7 + $0x18] sm:$0xff]
    %v217 = vld [vmem:[%s6] sm:$0x1]
    %v219 = vlaneseq
    %v220 = vshrl.u32 %v219, 7
    %v221 = vsub.s32 0, %v220
    %v222 = vrot.slane %v217, %v221
    %224 = vmatprep.subr.mxu0 0.0
    %225 = vmatpush1.msra.mxu0 0.0
    %226 = vmatprep.subr.mxu0 0.0
    %227 = vmatpush1.msra.mxu0 0.0
    %228 = vmatprep.subr.mxu0 0.0
    %229 = vmatpush1.msra.mxu0 0.0
    %230 = vmatprep.subr.mxu0 0.0
    %231 = vmatpush1.msra.mxu0 0.0
    %232 = vmatprep.subr.mxu0 0.0
    %233 = vmatpush1.msra.mxu0 0.0
    %234 = vmatprep.subr.mxu0 0.0
    %235 = vmatpush1.msra.mxu0 0.0
    %236 = vmatprep.subr.mxu0 0.0
    %237 = vmatpush1.msra.mxu0 0.0
    %238 = vmatprep.subr.mxu0 0.0
    %239 = vmatpush1.msra.mxu0 0.0
    %240 = vmatprep.subr.mxu0 0.0
    %241 = vmatpush1.msra.mxu0 0.0
    %242 = vmatprep.subr.mxu0 0.0
    %243 = vmatpush1.msra.mxu0 0.0
    %244 = vmatprep.subr.mxu0 0.0
    %245 = vmatpush1.msra.mxu0 0.0
    %246 = vmatprep.subr.mxu0 0.0
    %247 = vmatpush1.msra.mxu0 0.0
    %248 = vmatprep.subr.mxu0 0.0
    %249 = vmatpush1.msra.mxu0 %v216
    %250 = vmatprep.subr.mxu0 0.0
    %251 = vmatpush1.msra.mxu0 %v215
    %252 = vmatprep.subr.mxu0 0.0
    %253 = vmatpush1.msra.mxu0 %v214
    %254 = vmatprep.subr.mxu0 0.0
    %255 = vmatpush1.msra.mxu0 %v213
    %256 = vmatprep.subr.mxu0 0.0
    %257 = vmatpush2.msra.mxu0 0.0
    %258 = vmatprep.subr.mxu0 0.0
    %259 = vmatpush2.msra.mxu0 0.0
    %260 = vmatprep.subr.mxu0 0.0
    %261 = vmatpush2.msra.mxu0 0.0
    %262 = vmatprep.subr.mxu0 0.0
    %263 = vmatpush2.msra.mxu0 0.0
    %264 = vmatprep.subr.mxu0 0.0
    %265 = vmatpush2.msra.mxu0 0.0
    %266 = vmatprep.subr.mxu0 0.0
    %267 = vmatpush2.msra.mxu0 0.0
    %268 = vmatprep.subr.mxu0 0.0
    %269 = vmatpush2.msra.mxu0 0.0
    %270 = vmatprep.subr.mxu0 0.0
    %271 = vmatpush2.msra.mxu0 0.0
    %272 = vmatprep.subr.mxu0 0.0
    %273 = vmatpush2.msra.mxu0 0.0
    %274 = vmatprep.subr.mxu0 0.0
    %275 = vmatpush2.msra.mxu0 0.0
    %276 = vmatprep.subr.mxu0 0.0
    %277 = vmatpush2.msra.mxu0 0.0
    %278 = vmatprep.subr.mxu0 0.0
    %279 = vmatpush2.msra.mxu0 0.0
    %280 = vmatprep.subr.mxu0 0.0
    %281 = vmatpush2.msra.mxu0 0.0
    %282 = vmatprep.subr.mxu0 0.0
    %283 = vmatpush2.msra.mxu0 0.0
    %284 = vmatprep.subr.mxu0 0.0
    %285 = vmatpush2.msra.mxu0 0.0
    %286 = vmatprep.subr.mxu0 0.0
    %287 = vmatpush2.msra.mxu0 0.0
    %288 = vmatprep.mubr.f32.mxu0 0.0
    %289 = vmatmul.mubr.f32.gmra.mxu0 %v131
    %v290 = vpop.f32.mrf.mxu0
    %v291 = vadd.f32 %v222, %v290
    %v292 = vpop.f32.mrf.mxu0
    %293 = vmatprep.mubr.f32.mxu0 0.0
    %294 = vmatmul.mubr.f32.gmra.mxu0 %v134
    %v295 = vpop.f32.mrf.mxu0
    %v296 = vadd.f32 %v222, %v295
    %v297 = vpop.f32.mrf.mxu0
    %298 = vdwg.mxu0
    %299 = vst [vmem:[#allocation9] sm:$0xff] %v291
    %300 = vst [vmem:[#allocation9 + $0x8] sm:$0xff] %v296
    // Predicated region
    $region42: #{tpu_custom_call.1} parent=1 // pred_check
      _
    $region43: #{tpu_custom_call.1} parent=1 // pred_check_branch
      %302 = sbr.rel (0) target = $region45
    $region44: #{tpu_custom_call.1} parent=1 // pred_region
      %s304 = ssub.s32 256, 256
      %305 = vsyncadd [#allocation4], %s304
      %s306 = sshll.u32 [#allocation8], 4
      %s307 = int_to_ptr.vmem [resolvable:$true] %s306
      %312 = dma.vmem_to_hbm [thread:$0]  %s307, 256, %s7, [#allocation4], 128, 128, 8
    $region45: #{tpu_custom_call.1} parent=1 // pred_fallthru
      _
    // Predicated region
    $region46: #{tpu_custom_call.1} parent=1 // pred_check
      _
    $region47: #{tpu_custom_call.1} parent=1 // pred_check_branch
      %314 = sbr.rel (0) target = $region49
    $region48: #{tpu_custom_call.1} parent=1 // pred_region
      %s316 = ssub.s32 256, 256
      %317 = vsyncadd [#allocation10], %s316
      %s318 = sshll.u32 [#allocation9], 4
      %s319 = int_to_ptr.vmem [resolvable:$true] %s318
      %324 = dma.vmem_to_hbm [thread:$0]  %s319, 256, %s8, [#allocation10], 128, 128, 8
    $region49: #{tpu_custom_call.1} parent=1 // pred_fallthru
      _
    // Predicated region
    $region50: #{tpu_custom_call.1} parent=1 // pred_check
      _
    $region51: #{tpu_custom_call.1} parent=1 // pred_check_branch
      %326 = sbr.rel (0) target = $region53
    $region52: #{tpu_custom_call.1} parent=1 // pred_region
      %327 = dma.done [#allocation4], 256
    $region53: #{tpu_custom_call.1} parent=1 // pred_fallthru
      _
    // Predicated region
    $region54: #{tpu_custom_call.1} parent=1 // pred_check
      _
    $region55: #{tpu_custom_call.1} parent=1 // pred_check_branch
      %329 = sbr.rel (0) target = $region57
    $region56: #{tpu_custom_call.1} parent=1 // pred_region
      %330 = dma.done [#allocation10], 256
    $region57: #{tpu_custom_call.1} parent=1 // pred_fallthru
      _
    %331 = vsyncpa [#allocation3], 1
    %332 = vsyncpa [#allocation6], 1
    %333 = vsyncpa [#allocation4], 1
    %334 = vsyncpa [#allocation10], 1

</llo_original>
